<compile_context>
chip_gen: v7x
topology: tpu7x:2x2x1
jax: 0.10.0
libtpu: 0.0.40
codegen_flags: <defaults>
</compile_context>

<pallas_src>
import jax
import jax.numpy as jnp
from jax.experimental import pallas as pl
from jax.experimental.pallas import tpu as pltpu

IN_DIM     = 24 + 4 * 13 * 6   # 336
H1         = 128
H2         = 128
H3         = 64
H3_PAD     = 128               # pad narrow fc4 output to full lane width (VMEM only)
ACTS_NUM   = 8                 # acts_num chosen for the synthetic example
OUT_PAD    = 128               # fc5 computed at N=128 in-kernel; only :ACTS_NUM stored
TILE_B_MAX = 2048              # safe on v5e/v6e/v7x with the 32 MiB vmem limit below


def _round_up(x, m):
    return (x + m - 1) // m * m


def _choose_tile_b(B, max_tile=TILE_B_MAX):
    """Adaptive batch tile: big tiles for low per-step overhead, <~10% padding
    waste, and >=2 grid steps at comfortable sizes (v7x megacore)."""
    Bp8 = _round_up(B, 8)
    if Bp8 <= max_tile:
        # Single tile covers the batch with <8 rows of padding; split in two
        # once comfortably large so both v7x TensorCores get work.
        if Bp8 >= 1024 and Bp8 % 16 == 0:
            return Bp8 // 2
        return Bp8
    # Large batch: largest standard tile whose padding waste is <10%.
    tb = 256
    for cand in (512, 1024, 2048, 4096):
        if cand > max_tile:
            break
        if (_round_up(Bp8, cand) - Bp8) * 10 <= Bp8:
            tb = cand
    return tb


def _mlp_kernel(x_ref,
                w2t_ref, b2_ref,
                w3t_ref, b3_ref,
                w4t_ref, b4_ref,
                w5t_ref, b5_ref,
                o_ref):
    # x tile: [tb, 336] f32 straight from HBM; bf16 cast happens here (free
    # VPU filler). Four MXU matmuls with f32 accumulation; bias-add + ReLU run
    # in f32 on the VPU.
    x = x_ref[...].astype(jnp.bfloat16)

    h = jnp.dot(x, w2t_ref[...], preferred_element_type=jnp.float32) + b2_ref[...]
    h = jnp.maximum(h, 0.0)

    h = jnp.dot(h.astype(jnp.bfloat16), w3t_ref[...],
                preferred_element_type=jnp.float32) + b3_ref[...]
    h = jnp.maximum(h, 0.0)

    h = jnp.dot(h.astype(jnp.bfloat16), w4t_ref[...],
                preferred_element_type=jnp.float32) + b4_ref[...]
    h = jnp.maximum(h, 0.0)

    h = jnp.dot(h.astype(jnp.bfloat16), w5t_ref[...],
                preferred_element_type=jnp.float32) + b5_ref[...]

    # Store only the real logits (narrow, masked store; HBM writeback is tiny).
    o_ref[...] = h[:, :o_ref.shape[1]].astype(o_ref.dtype)


def mlp_forward(x, params, max_tile_b=TILE_B_MAX):
    """x: [B, 336] float32 (unpadded). params: pre-transposed ([in, out]) weights."""
    B = x.shape[0]
    tb = _choose_tile_b(B, max_tile_b)
    Bp = _round_up(B, tb)
    xp = x if Bp == B else jnp.pad(x, ((0, Bp - B), (0, 0)))  # only when needed

    args = (xp,
            params["w2t"], params["b2"],
            params["w3t"], params["b3"],
            params["w4t"], params["b4"],
            params["w5t"], params["b5"])

    # Weights / biases: constant block index -> DMA'd once, resident in VMEM.
    def resident(a):
        return pl.BlockSpec(a.shape, lambda i: (0, 0))

    in_specs = [pl.BlockSpec((tb, IN_DIM), lambda i: (i, 0))] + \
               [resident(a) for a in args[1:]]

    out = pl.pallas_call(
        _mlp_kernel,
        out_shape=jax.ShapeDtypeStruct((Bp, ACTS_NUM), jnp.float32),
        grid_spec=pltpu.PrefetchScalarGridSpec(
            num_scalar_prefetch=0,
            grid=(Bp // tb,),
            in_specs=in_specs,
            out_specs=pl.BlockSpec((tb, ACTS_NUM), lambda i: (i, 0)),
        ),
        compiler_params=pltpu.CompilerParams(
            dimension_semantics=("parallel",),      # megacore sharding on v7x
            vmem_limit_bytes=32 * 1024 * 1024,      # covers tb=2048 on v5e too
        ),
    )(*args)

    return out if Bp == B else out[:B]


def init_params(key):
    """PyTorch-Linear-style init (U(-1/sqrt(fan_in), +)), then pad + cast."""
    def linear(key, fan_in, fan_out):
        kw, kb = jax.random.split(key)
        bound = 1.0 / jnp.sqrt(fan_in)
        wt = jax.random.uniform(kw, (fan_in, fan_out), jnp.float32, -bound, bound)
        b = jax.random.uniform(kb, (1, fan_out), jnp.float32, -bound, bound)
        return wt, b

    k2, k3, k4, k5 = jax.random.split(key, 4)
    w2t, b2 = linear(k2, IN_DIM, H1)
    w3t, b3 = linear(k3, H1, H2)
    w4t, b4 = linear(k4, H2, H3)
    w5t, b5 = linear(k5, H3, ACTS_NUM)

    # Zero-pad the narrow fc4/fc5 dims to full 128 lanes (VMEM/MXU alignment).
    # Padded columns have zero weight and zero bias, so they stay exactly 0
    # through ReLU, and padded w5t rows are zero, so nothing leaks into the
    # real outputs (which are the only lanes stored).
    w4t = jnp.pad(w4t, ((0, 0), (0, H3_PAD - H3)))
    b4 = jnp.pad(b4, ((0, 0), (0, H3_PAD - H3)))
    w5t = jnp.pad(w5t, ((0, H3_PAD - H3), (0, OUT_PAD - ACTS_NUM)))
    b5 = jnp.pad(b5, ((0, 0), (0, OUT_PAD - ACTS_NUM)))

    # bf16 matmul operands (full-rate MXU on v6e/v7x, half the weight DMA);
    # biases stay f32 so bias-add / ReLU run on the f32 accumulators.
    return dict(w2t=w2t.astype(jnp.bfloat16), b2=b2,
                w3t=w3t.astype(jnp.bfloat16), b3=b3,
                w4t=w4t.astype(jnp.bfloat16), b4=b4,
                w5t=w5t.astype(jnp.bfloat16), b5=b5)


def mlp_forward_ref(x, p):
    """Pure-JAX reference using the identical bf16/f32 numeric path."""
    h = jnp.maximum(jnp.dot(x.astype(jnp.bfloat16), p["w2t"],
                            preferred_element_type=jnp.float32) + p["b2"], 0.0)
    h = jnp.maximum(jnp.dot(h.astype(jnp.bfloat16), p["w3t"],
                            preferred_element_type=jnp.float32) + p["b3"], 0.0)
    h = jnp.maximum(jnp.dot(h.astype(jnp.bfloat16), p["w4t"],
                            preferred_element_type=jnp.float32) + p["b4"], 0.0)
    h = jnp.dot(h.astype(jnp.bfloat16), p["w5t"],
                preferred_element_type=jnp.float32) + p["b5"]
    return h[:, :ACTS_NUM]


if __name__ == "__main__":
    key = jax.random.PRNGKey(0)
    kx, kp = jax.random.split(key)
    params = init_params(kp)

    # Small smoke test (exact-tile path).
    B = 8
    x = jax.random.normal(kx, (B, IN_DIM), jnp.float32)
    out = jax.block_until_ready(mlp_forward(x, params))
    ref = mlp_forward_ref(x, params)
    assert out.shape == (B, ACTS_NUM)
    assert jnp.allclose(out, ref, atol=1e-2, rtol=1e-2), "mismatch vs reference"

    # Also exercise the batch-padding path (B not a multiple of 8).
    B2 = 50
    x2 = jax.random.normal(kx, (B2, IN_DIM), jnp.float32)
    out2 = jax.block_until_ready(mlp_forward(x2, params))
    ref2 = mlp_forward_ref(x2, params)
    assert out2.shape == (B2, ACTS_NUM)
    assert jnp.allclose(out2, ref2, atol=1e-2, rtol=1e-2), "mismatch vs reference (padded)"

    # TODO(synk): nn.Softmax(dim=0) is a separate method on the module, not
    # part of forward(); it is intentionally not fused here.
    print("KERNEL_OK")
</pallas_src>

<mosaic_0001>
module attributes {stable_mosaic.version = 11 : i64} {
  func.func @_mlp_kernel(%arg0: i32, %arg1: memref<8x336xf32, #tpu.memory_space<vmem>>, %arg2: memref<336x128xbf16, #tpu.memory_space<vmem>>, %arg3: memref<1x128xf32, #tpu.memory_space<vmem>>, %arg4: memref<128x128xbf16, #tpu.memory_space<vmem>>, %arg5: memref<1x128xf32, #tpu.memory_space<vmem>>, %arg6: memref<128x128xbf16, #tpu.memory_space<vmem>>, %arg7: memref<1x128xf32, #tpu.memory_space<vmem>>, %arg8: memref<128x128xbf16, #tpu.memory_space<vmem>>, %arg9: memref<1x128xf32, #tpu.memory_space<vmem>>, %arg10: memref<8x8xf32, #tpu.memory_space<vmem>>) attributes {dimension_semantics = [#tpu.dimension_semantics<parallel>], iteration_bounds = array<i64: 1>, scalar_prefetch = 0 : i64, scratch_operands = 0 : i64, tpu.core_type = #tpu.core_type<tc>, window_params = [{transform_indices = @transform_0, window_bounds = array<i64: 8, 336>}, {pipeline_mode = #tpu.pipeline_mode<synchronous>, transform_indices = @transform_1, window_bounds = array<i64: 336, 128>}, {pipeline_mode = #tpu.pipeline_mode<synchronous>, transform_indices = @transform_2, window_bounds = array<i64: 1, 128>}, {pipeline_mode = #tpu.pipeline_mode<synchronous>, transform_indices = @transform_3, window_bounds = array<i64: 128, 128>}, {pipeline_mode = #tpu.pipeline_mode<synchronous>, transform_indices = @transform_4, window_bounds = array<i64: 1, 128>}, {pipeline_mode = #tpu.pipeline_mode<synchronous>, transform_indices = @transform_5, window_bounds = array<i64: 128, 128>}, {pipeline_mode = #tpu.pipeline_mode<synchronous>, transform_indices = @transform_6, window_bounds = array<i64: 1, 128>}, {pipeline_mode = #tpu.pipeline_mode<synchronous>, transform_indices = @transform_7, window_bounds = array<i64: 128, 128>}, {pipeline_mode = #tpu.pipeline_mode<synchronous>, transform_indices = @transform_8, window_bounds = array<i64: 1, 128>}, {transform_indices = @transform_9, window_bounds = array<i64: 8, 8>}]} {
    %c0 = arith.constant 0 : index
    %c0_0 = arith.constant 0 : index
    %0 = vector.load %arg1[%c0, %c0_0] : memref<8x336xf32, #tpu.memory_space<vmem>>, vector<8x336xf32>
    %1 = arith.truncf %0 : vector<8x336xf32> to vector<8x336xbf16>
    %c0_1 = arith.constant 0 : index
    %c0_2 = arith.constant 0 : index
    %2 = vector.load %arg2[%c0_1, %c0_2] : memref<336x128xbf16, #tpu.memory_space<vmem>>, vector<336x128xbf16>
    %cst = arith.constant dense<0.000000e+00> : vector<8x128xf32>
    %3 = tpu.matmul %1, %2, %cst {dimension_numbers = #tpu.dot_dimension_numbers<[1], [0], [0], [1], [0, 0, 1, 1], [], []>} : vector<8x336xbf16>, vector<336x128xbf16>, vector<8x128xf32> -> vector<8x128xf32>
    %c0_3 = arith.constant 0 : index
    %c0_4 = arith.constant 0 : index
    %4 = vector.load %arg3[%c0_3, %c0_4] : memref<1x128xf32, #tpu.memory_space<vmem>>, vector<1x128xf32>
    %5 = vector.broadcast %4 : vector<1x128xf32> to vector<8x128xf32>
    %6 = arith.addf %3, %5 : vector<8x128xf32>
    %cst_5 = arith.constant 0.000000e+00 : f32
    %7 = vector.broadcast %cst_5 : f32 to vector<8x128xf32>
    %8 = arith.maximumf %6, %7 : vector<8x128xf32>
    %9 = arith.truncf %8 : vector<8x128xf32> to vector<8x128xbf16>
    %c0_6 = arith.constant 0 : index
    %c0_7 = arith.constant 0 : index
    %10 = vector.load %arg4[%c0_6, %c0_7] : memref<128x128xbf16, #tpu.memory_space<vmem>>, vector<128x128xbf16>
    %cst_8 = arith.constant dense<0.000000e+00> : vector<8x128xf32>
    %11 = tpu.matmul %9, %10, %cst_8 {dimension_numbers = #tpu.dot_dimension_numbers<[1], [0], [0], [1], [0, 0, 1, 1], [], []>} : vector<8x128xbf16>, vector<128x128xbf16>, vector<8x128xf32> -> vector<8x128xf32>
    %c0_9 = arith.constant 0 : index
    %c0_10 = arith.constant 0 : index
    %12 = vector.load %arg5[%c0_9, %c0_10] : memref<1x128xf32, #tpu.memory_space<vmem>>, vector<1x128xf32>
    %13 = vector.broadcast %12 : vector<1x128xf32> to vector<8x128xf32>
    %14 = arith.addf %11, %13 : vector<8x128xf32>
    %cst_11 = arith.constant 0.000000e+00 : f32
    %15 = vector.broadcast %cst_11 : f32 to vector<8x128xf32>
    %16 = arith.maximumf %14, %15 : vector<8x128xf32>
    %17 = arith.truncf %16 : vector<8x128xf32> to vector<8x128xbf16>
    %c0_12 = arith.constant 0 : index
    %c0_13 = arith.constant 0 : index
    %18 = vector.load %arg6[%c0_12, %c0_13] : memref<128x128xbf16, #tpu.memory_space<vmem>>, vector<128x128xbf16>
    %cst_14 = arith.constant dense<0.000000e+00> : vector<8x128xf32>
    %19 = tpu.matmul %17, %18, %cst_14 {dimension_numbers = #tpu.dot_dimension_numbers<[1], [0], [0], [1], [0, 0, 1, 1], [], []>} : vector<8x128xbf16>, vector<128x128xbf16>, vector<8x128xf32> -> vector<8x128xf32>
    %c0_15 = arith.constant 0 : index
    %c0_16 = arith.constant 0 : index
    %20 = vector.load %arg7[%c0_15, %c0_16] : memref<1x128xf32, #tpu.memory_space<vmem>>, vector<1x128xf32>
    %21 = vector.broadcast %20 : vector<1x128xf32> to vector<8x128xf32>
    %22 = arith.addf %19, %21 : vector<8x128xf32>
    %cst_17 = arith.constant 0.000000e+00 : f32
    %23 = vector.broadcast %cst_17 : f32 to vector<8x128xf32>
    %24 = arith.maximumf %22, %23 : vector<8x128xf32>
    %25 = arith.truncf %24 : vector<8x128xf32> to vector<8x128xbf16>
    %c0_18 = arith.constant 0 : index
    %c0_19 = arith.constant 0 : index
    %26 = vector.load %arg8[%c0_18, %c0_19] : memref<128x128xbf16, #tpu.memory_space<vmem>>, vector<128x128xbf16>
    %cst_20 = arith.constant dense<0.000000e+00> : vector<8x128xf32>
    %27 = tpu.matmul %25, %26, %cst_20 {dimension_numbers = #tpu.dot_dimension_numbers<[1], [0], [0], [1], [0, 0, 1, 1], [], []>} : vector<8x128xbf16>, vector<128x128xbf16>, vector<8x128xf32> -> vector<8x128xf32>
    %c0_21 = arith.constant 0 : index
    %c0_22 = arith.constant 0 : index
    %28 = vector.load %arg9[%c0_21, %c0_22] : memref<1x128xf32, #tpu.memory_space<vmem>>, vector<1x128xf32>
    %29 = vector.broadcast %28 : vector<1x128xf32> to vector<8x128xf32>
    %30 = arith.addf %27, %29 : vector<8x128xf32>
    %31 = vector.extract_strided_slice %30 {offsets = [0, 0], sizes = [8, 8], strides = [1, 1]} : vector<8x128xf32> to vector<8x8xf32>
    %c0_23 = arith.constant 0 : index
    %c0_24 = arith.constant 0 : index
    %32 = vector.load %arg10[%c0_23, %c0_24] : memref<8x8xf32, #tpu.memory_space<vmem>>, vector<8x8xf32>
    tpu.vector_store %arg10[%c0_23, %c0_24], %31 {strides = array<i32>} : memref<8x8xf32, #tpu.memory_space<vmem>>, vector<8x8xf32>,
    return
  }
  func.func @transform_0(%arg0: i32) -> (i32, i32) {
    %c0_i32 = arith.constant 0 : i32
    %c0_i32_0 = arith.constant 0 : i32
    return %arg0, %c0_i32 : i32, i32
  }
  func.func @transform_1(%arg0: i32) -> (i32, i32) {
    %c0_i32 = arith.constant 0 : i32
    %c0_i32_0 = arith.constant 0 : i32
    %c0_i32_1 = arith.constant 0 : i32
    return %c0_i32, %c0_i32_0 : i32, i32
  }
  func.func @transform_2(%arg0: i32) -> (i32, i32) {
    %c0_i32 = arith.constant 0 : i32
    %c0_i32_0 = arith.constant 0 : i32
    %c0_i32_1 = arith.constant 0 : i32
    return %c0_i32, %c0_i32_0 : i32, i32
  }
  func.func @transform_3(%arg0: i32) -> (i32, i32) {
    %c0_i32 = arith.constant 0 : i32
    %c0_i32_0 = arith.constant 0 : i32
    %c0_i32_1 = arith.constant 0 : i32
    return %c0_i32, %c0_i32_0 : i32, i32
  }
  func.func @transform_4(%arg0: i32) -> (i32, i32) {
    %c0_i32 = arith.constant 0 : i32
    %c0_i32_0 = arith.constant 0 : i32
    %c0_i32_1 = arith.constant 0 : i32
    return %c0_i32, %c0_i32_0 : i32, i32
  }
  func.func @transform_5(%arg0: i32) -> (i32, i32) {
    %c0_i32 = arith.constant 0 : i32
    %c0_i32_0 = arith.constant 0 : i32
    %c0_i32_1 = arith.constant 0 : i32
    return %c0_i32, %c0_i32_0 : i32, i32
  }
  func.func @transform_6(%arg0: i32) -> (i32, i32) {
    %c0_i32 = arith.constant 0 : i32
    %c0_i32_0 = arith.constant 0 : i32
    %c0_i32_1 = arith.constant 0 : i32
    return %c0_i32, %c0_i32_0 : i32, i32
  }
  func.func @transform_7(%arg0: i32) -> (i32, i32) {
    %c0_i32 = arith.constant 0 : i32
    %c0_i32_0 = arith.constant 0 : i32
    %c0_i32_1 = arith.constant 0 : i32
    return %c0_i32, %c0_i32_0 : i32, i32
  }
  func.func @transform_8(%arg0: i32) -> (i32, i32) {
    %c0_i32 = arith.constant 0 : i32
    %c0_i32_0 = arith.constant 0 : i32
    %c0_i32_1 = arith.constant 0 : i32
    return %c0_i32, %c0_i32_0 : i32, i32
  }
  func.func @transform_9(%arg0: i32) -> (i32, i32) {
    %c0_i32 = arith.constant 0 : i32
    %c0_i32_0 = arith.constant 0 : i32
    return %arg0, %c0_i32 : i32, i32
  }
}

</mosaic_0001>

<llo_original>
// kernel: tpu_custom_call.1
$region0: #{tpu_custom_call.1}
  #allocation0 [shape = 'u32[]', space=smem, size = 0x4, offset = 0x4, fixed_abs, tag = 'smem constant byte address 0x4 - core index']
  #allocation1 [shape = 'u32[144,128]{1,0:T(1,128)}', space=vmem, size = 0x12000, scoped, tag = 'internal scratch']
  %s0 = inlined_call_operand.hbm [shape: f32[8,336], index: 0, kind: input, shape index: {}]
  %s1 = inlined_call_operand.hbm [shape: bf16[336,128], index: 1, kind: input, shape index: {}]
  %s2 = inlined_call_operand.vmem [shape: f32[1,128], index: 2, kind: input, shape index: {}]
  %s3 = inlined_call_operand.hbm [shape: bf16[128,128], index: 3, kind: input, shape index: {}]
  %s4 = inlined_call_operand.vmem [shape: f32[1,128], index: 4, kind: input, shape index: {}]
  %s5 = inlined_call_operand.hbm [shape: bf16[128,128], index: 5, kind: input, shape index: {}]
  %s6 = inlined_call_operand.vmem [shape: f32[1,128], index: 6, kind: input, shape index: {}]
  %s7 = inlined_call_operand.hbm [shape: bf16[128,128], index: 7, kind: input, shape index: {}]
  %s8 = inlined_call_operand.vmem [shape: f32[1,128], index: 8, kind: input, shape index: {}]
  %s9 = inlined_call_operand.hbm [shape: f32[8,8], index: 9, kind: output, shape index: {}]
  %s10 = sld [smem:[#allocation0]]
  $region66: #{tpu_custom_call.1} parent=0
    _
  %s12 = ssub.s32 1, %s10
  %s13 = scalar_select 0, %s12, %s10
  $region1: #{tpu_custom_call.1} parent=0
    #allocation2 [shape = 'u8[12288]{0}', space=vmem, size = 0x3000, scoped, tag = 'input window, operand 0, single buffered']
    #allocation3 [shape = 's32[1]{0}', space=sflag, size = 0x4, scoped, tag = 'scoped memory for tpu_custom_call.1']
    #allocation4 [shape = 's32[1]{0}', space=sflag, size = 0x4, scoped, tag = 'scoped memory for tpu_custom_call.1']
    #allocation5 [shape = 'u8[86016]{0}', space=vmem, size = 0x15000, scoped, tag = 'input window, operand 1, single buffered']
    #allocation6 [shape = 's32[1]{0}', space=sflag, size = 0x4, scoped, tag = 'scoped memory for tpu_custom_call.1']
    #allocation7 [shape = 'u8[32768]{0}', space=vmem, size = 0x8000, scoped, tag = 'input window, operand 3, single buffered']
    #allocation8 [shape = 'u8[32768]{0}', space=vmem, size = 0x8000, scoped, tag = 'input window, operand 5, single buffered']
    #allocation9 [shape = 's32[1]{0}', space=sflag, size = 0x4, scoped, tag = 'scoped memory for tpu_custom_call.1']
    #allocation10 [shape = 'u8[32768]{0}', space=vmem, size = 0x8000, scoped, tag = 'input window, operand 7, single buffered']
    #allocation11 [shape = 'u8[4096]{0}', space=vmem, size = 0x1000, scoped, tag = 'output window, operand 0, single buffered']
    %14 = vsyncpa [#allocation3], 0
    %15 = vsyncpa [#allocation6], 0
    %16 = vsyncpa [#allocation9], 0
    %17 = vsyncpa [#allocation4], 0
    // Predicated region
    $region2: #{tpu_custom_call.1} parent=1 // pred_check
      _
    $region3: #{tpu_custom_call.1} parent=1 // pred_check_branch
      %19 = sbr.rel (0) target = $region5
    $region4: #{tpu_custom_call.1} parent=1 // pred_region
      %s21 = ssub.s32 384, 384
      %22 = vsyncadd [#allocation3], %s21
      %s24 = sshll.u32 [#allocation2], 4
      %s25 = int_to_ptr.vmem [resolvable:$true] %s24
      %27 = dma.hbm_to_vmem [thread:$0]  %s0, 384, %s25, [#allocation3]
    $region5: #{tpu_custom_call.1} parent=1 // pred_fallthru
      _
    // Predicated region
    $region6: #{tpu_custom_call.1} parent=1 // pred_check
      _
    $region7: #{tpu_custom_call.1} parent=1 // pred_check_branch
      %29 = sbr.rel (0) target = $region9
    $region8: #{tpu_custom_call.1} parent=1 // pred_region
      %s31 = ssub.s32 2688, 2688
      %32 = vsyncadd [#allocation6], %s31
      %s33 = sshll.u32 [#allocation5], 4
      %s34 = int_to_ptr.vmem [resolvable:$true] %s33
      %39 = dma.hbm_to_vmem [thread:$0]  %s1, 2688, %s34, [#allocation6], 64, 64, 4
    $region9: #{tpu_custom_call.1} parent=1 // pred_fallthru
      _
    // Predicated region
    $region10: #{tpu_custom_call.1} parent=1 // pred_check
      _
    $region11: #{tpu_custom_call.1} parent=1 // pred_check_branch
      %41 = sbr.rel (0) target = $region13
    $region12: #{tpu_custom_call.1} parent=1 // pred_region
      _
    $region13: #{tpu_custom_call.1} parent=1 // pred_fallthru
      _
    // Predicated region
    $region14: #{tpu_custom_call.1} parent=1 // pred_check
      _
    $region15: #{tpu_custom_call.1} parent=1 // pred_check_branch
      %43 = sbr.rel (0) target = $region17
    $region16: #{tpu_custom_call.1} parent=1 // pred_region
      %s45 = ssub.s32 1024, 1024
      %46 = vsyncadd [#allocation6], %s45
      %s47 = sshll.u32 [#allocation7], 4
      %s48 = int_to_ptr.vmem [resolvable:$true] %s47
      %53 = dma.hbm_to_vmem [thread:$0]  %s3, 1024, %s48, [#allocation6], 64, 64, 4
    $region17: #{tpu_custom_call.1} parent=1 // pred_fallthru
      _
    // Predicated region
    $region18: #{tpu_custom_call.1} parent=1 // pred_check
      _
    $region19: #{tpu_custom_call.1} parent=1 // pred_check_branch
      %55 = sbr.rel (0) target = $region21
    $region20: #{tpu_custom_call.1} parent=1 // pred_region
      _
    $region21: #{tpu_custom_call.1} parent=1 // pred_fallthru
      _
    // Predicated region
    $region22: #{tpu_custom_call.1} parent=1 // pred_check
      _
    $region23: #{tpu_custom_call.1} parent=1 // pred_check_branch
      %57 = sbr.rel (0) target = $region25
    $region24: #{tpu_custom_call.1} parent=1 // pred_region
      %s59 = ssub.s32 1024, 1024
      %60 = vsyncadd [#allocation9], %s59
      %s61 = sshll.u32 [#allocation8], 4
      %s62 = int_to_ptr.vmem [resolvable:$true] %s61
      %67 = dma.hbm_to_vmem [thread:$0]  %s5, 1024, %s62, [#allocation9], 64, 64, 4
    $region25: #{tpu_custom_call.1} parent=1 // pred_fallthru
      _
    // Predicated region
    $region26: #{tpu_custom_call.1} parent=1 // pred_check
      _
    $region27: #{tpu_custom_call.1} parent=1 // pred_check_branch
      %69 = sbr.rel (0) target = $region29
    $region28: #{tpu_custom_call.1} parent=1 // pred_region
      _
    $region29: #{tpu_custom_call.1} parent=1 // pred_fallthru
      _
    // Predicated region
    $region30: #{tpu_custom_call.1} parent=1 // pred_check
      _
    $region31: #{tpu_custom_call.1} parent=1 // pred_check_branch
      %71 = sbr.rel (0) target = $region33
    $region32: #{tpu_custom_call.1} parent=1 // pred_region
      %s73 = ssub.s32 1024, 1024
      %74 = vsyncadd [#allocation9], %s73
      %s75 = sshll.u32 [#allocation10], 4
      %s76 = int_to_ptr.vmem [resolvable:$true] %s75
      %81 = dma.hbm_to_vmem [thread:$0]  %s7, 1024, %s76, [#allocation9], 64, 64, 4
    $region33: #{tpu_custom_call.1} parent=1 // pred_fallthru
      _
    // Predicated region
    $region34: #{tpu_custom_call.1} parent=1 // pred_check
      _
    $region35: #{tpu_custom_call.1} parent=1 // pred_check_branch
      %83 = sbr.rel (0) target = $region37
    $region36: #{tpu_custom_call.1} parent=1 // pred_region
      _
    $region37: #{tpu_custom_call.1} parent=1 // pred_fallthru
      _
    // Predicated region
    $region38: #{tpu_custom_call.1} parent=1 // pred_check
      _
    $region39: #{tpu_custom_call.1} parent=1 // pred_check_branch
      %85 = sbr.rel (0) target = $region41
    $region40: #{tpu_custom_call.1} parent=1 // pred_region
      %86 = dma.done [#allocation3], 384
    $region41: #{tpu_custom_call.1} parent=1 // pred_fallthru
      _
    // Predicated region
    $region42: #{tpu_custom_call.1} parent=1 // pred_check
      _
    $region43: #{tpu_custom_call.1} parent=1 // pred_check_branch
      %88 = sbr.rel (0) target = $region45
    $region44: #{tpu_custom_call.1} parent=1 // pred_region
      %89 = dma.done [#allocation6], 2688
    $region45: #{tpu_custom_call.1} parent=1 // pred_fallthru
      _
    // Predicated region
    $region46: #{tpu_custom_call.1} parent=1 // pred_check
      _
    $region47: #{tpu_custom_call.1} parent=1 // pred_check_branch
      %91 = sbr.rel (0) target = $region49
    $region48: #{tpu_custom_call.1} parent=1 // pred_region
      %92 = dma.done [#allocation6], 1024
    $region49: #{tpu_custom_call.1} parent=1 // pred_fallthru
      _
    // Predicated region
    $region50: #{tpu_custom_call.1} parent=1 // pred_check
      _
    $region51: #{tpu_custom_call.1} parent=1 // pred_check_branch
      %94 = sbr.rel (0) target = $region53
    $region52: #{tpu_custom_call.1} parent=1 // pred_region
      %95 = dma.done [#allocation9], 1024
    $region53: #{tpu_custom_call.1} parent=1 // pred_fallthru
      _
    // Predicated region
    $region54: #{tpu_custom_call.1} parent=1 // pred_check
      _
    $region55: #{tpu_custom_call.1} parent=1 // pred_check_branch
      %97 = sbr.rel (0) target = $region57
    $region56: #{tpu_custom_call.1} parent=1 // pred_region
      %98 = dma.done [#allocation9], 1024
    $region57: #{tpu_custom_call.1} parent=1 // pred_fallthru
      _
    %v100 = vld [vmem:[#allocation2] sm:$0xff]
    %v101 = vld [vmem:[#allocation2 + $0x8] sm:$0xff]
    %v102 = vld [vmem:[#allocation2 + $0x10] sm:$0xff]
    %v103 = vpack.c.bf16 %v100, %v100
    %v104 = vpack.c.bf16 %v101, %v101
    %v105 = vpack.c.bf16 %v102, %v102
    %v106 = vld [vmem:[#allocation5] sm:$0xf]
    %v107 = vld [vmem:[#allocation5 + $0x4] sm:$0xf]
    %v108 = vld [vmem:[#allocation5 + $0x8] sm:$0xf]
    %v109 = vld [vmem:[#allocation5 + $0xc] sm:$0xf]
    %v110 = vld [vmem:[#allocation5 + $0x10] sm:$0xf]
    %v111 = vld [vmem:[#allocation5 + $0x14] sm:$0xf]
    %v112 = vld [vmem:[#allocation5 + $0x18] sm:$0xf]
    %v113 = vld [vmem:[#allocation5 + $0x1c] sm:$0xf]
    %v114 = vld [vmem:[#allocation5 + $0x20] sm:$0xf]
    %v115 = vld [vmem:[#allocation5 + $0x24] sm:$0xf]
    %v116 = vld [vmem:[#allocation5 + $0x28] sm:$0xf]
    %v117 = vld [vmem:[#allocation5 + $0x2c] sm:$0xf]
    %v118 = vld [vmem:[#allocation5 + $0x30] sm:$0xf]
    %v119 = vld [vmem:[#allocation5 + $0x34] sm:$0xf]
    %v120 = vld [vmem:[#allocation5 + $0x38] sm:$0xf]
    %v121 = vld [vmem:[#allocation5 + $0x3c] sm:$0xf]
    %v122 = vld [vmem:[#allocation5 + $0x40] sm:$0xf]
    %v123 = vld [vmem:[#allocation5 + $0x44] sm:$0xf]
    %v124 = vld [vmem:[#allocation5 + $0x48] sm:$0xf]
    %v125 = vld [vmem:[#allocation5 + $0x4c] sm:$0xf]
    %v126 = vld [vmem:[#allocation5 + $0x50] sm:$0xf]
    %v127 = vld [vmem:[#allocation5 + $0x54] sm:$0xf]
    %v128 = vld [vmem:[#allocation5 + $0x58] sm:$0xf]
    %v129 = vld [vmem:[#allocation5 + $0x5c] sm:$0xf]
    %v130 = vld [vmem:[#allocation5 + $0x60] sm:$0xf]
    %v131 = vld [vmem:[#allocation5 + $0x64] sm:$0xf]
    %v132 = vld [vmem:[#allocation5 + $0x68] sm:$0xf]
    %v133 = vld [vmem:[#allocation5 + $0x6c] sm:$0xf]
    %v134 = vld [vmem:[#allocation5 + $0x70] sm:$0xf]
    %v135 = vld [vmem:[#allocation5 + $0x74] sm:$0xf]
    %v136 = vld [vmem:[#allocation5 + $0x78] sm:$0xf]
    %v137 = vld [vmem:[#allocation5 + $0x7c] sm:$0xf]
    %v138 = vld [vmem:[#allocation5 + $0x80] sm:$0xf]
    %v139 = vld [vmem:[#allocation5 + $0x84] sm:$0xf]
    %v140 = vld [vmem:[#allocation5 + $0x88] sm:$0xf]
    %v141 = vld [vmem:[#allocation5 + $0x8c] sm:$0xf]
    %v142 = vld [vmem:[#allocation5 + $0x90] sm:$0xf]
    %v143 = vld [vmem:[#allocation5 + $0x94] sm:$0xf]
    %v144 = vld [vmem:[#allocation5 + $0x98] sm:$0xf]
    %v145 = vld [vmem:[#allocation5 + $0x9c] sm:$0xf]
    %v146 = vld [vmem:[#allocation5 + $0xa0] sm:$0xf]
    %v147 = vld [vmem:[#allocation5 + $0xa4] sm:$0xf]
    %v148 = vld [vmem:[%s2] sm:$0x1]
    %v150 = vlaneseq
    %v151 = vshrl.u32 %v150, 7
    %v152 = vsub.s32 0, %v151
    %v153 = vrot.slane %v148, %v152
    %v197 = vunpack.c.l.b16 %v106
    %v198 = vunpack.c.l.b16 %v107
    %v199 = vunpack.c.l.b16 %v108
    %v200 = vunpack.c.l.b16 %v109
    %v201 = vunpack.c.l.b16 %v110
    %v202 = vunpack.c.l.b16 %v111
    %v203 = vunpack.c.l.b16 %v112
    %v204 = vunpack.c.l.b16 %v113
    %v205 = vunpack.c.l.b16 %v114
    %v206 = vunpack.c.l.b16 %v115
    %v207 = vunpack.c.l.b16 %v116
    %v208 = vunpack.c.l.b16 %v117
    %v209 = vunpack.c.l.b16 %v118
    %v210 = vunpack.c.l.b16 %v119
    %v211 = vunpack.c.l.b16 %v120
    %v212 = vunpack.c.l.b16 %v121
    %v213 = vunpack.c.l.b16 %v122
    %v214 = vunpack.c.l.b16 %v123
    %v215 = vunpack.c.l.b16 %v124
    %v216 = vunpack.c.l.b16 %v125
    %v217 = vunpack.c.l.b16 %v126
    %v218 = vunpack.c.l.b16 %v127
    %v219 = vunpack.c.l.b16 %v128
    %v220 = vunpack.c.l.b16 %v129
    %v221 = vunpack.c.l.b16 %v130
    %v222 = vunpack.c.l.b16 %v131
    %v223 = vunpack.c.l.b16 %v132
    %v224 = vunpack.c.l.b16 %v133
    %v225 = vunpack.c.l.b16 %v134
    %v226 = vunpack.c.l.b16 %v135
    %v227 = vunpack.c.l.b16 %v136
    %v228 = vunpack.c.l.b16 %v137
    %v229 = vunpack.c.l.b16 %v138
    %v230 = vunpack.c.l.b16 %v139
    %v231 = vunpack.c.l.b16 %v140
    %v232 = vunpack.c.l.b16 %v141
    %v233 = vunpack.c.l.b16 %v142
    %v234 = vunpack.c.l.b16 %v143
    %v235 = vunpack.c.l.b16 %v144
    %v236 = vunpack.c.l.b16 %v145
    %v237 = vunpack.c.l.b16 %v146
    %v238 = vunpack.c.l.b16 %v147
    %v239 = vpack.c.b16 %v198, %v197
    %v240 = vpack.c.b16 %v200, %v199
    %v241 = vpack.c.b16 %v202, %v201
    %v242 = vpack.c.b16 %v204, %v203
    %v243 = vpack.c.b16 %v206, %v205
    %v244 = vpack.c.b16 %v208, %v207
    %v245 = vpack.c.b16 %v210, %v209
    %v246 = vpack.c.b16 %v212, %v211
    %v247 = vpack.c.b16 %v214, %v213
    %v248 = vpack.c.b16 %v216, %v215
    %v249 = vpack.c.b16 %v218, %v217
    %v250 = vpack.c.b16 %v220, %v219
    %v251 = vpack.c.b16 %v222, %v221
    %v252 = vpack.c.b16 %v224, %v223
    %v253 = vpack.c.b16 %v226, %v225
    %v254 = vpack.c.b16 %v228, %v227
    %v255 = vpack.c.b16 %v230, %v229
    %v256 = vpack.c.b16 %v232, %v231
    %v257 = vpack.c.b16 %v234, %v233
    %v258 = vpack.c.b16 %v236, %v235
    %v259 = vpack.c.b16 %v238, %v237
    %vm281 = vcmask 654336
    %v283 = vsel %vm281, %v105, 0
    %285 = vmatprep.subr.bf16.mxu0 0
    %286 = vmatpush1.bf16.msra.mxu0 %v239
    %287 = vmatprep.subr.bf16.mxu0 0
    %288 = vmatpush1.bf16.msra.mxu0 %v240
    %289 = vmatprep.subr.bf16.mxu0 0
    %290 = vmatpush1.bf16.msra.mxu0 %v241
    %291 = vmatprep.subr.bf16.mxu0 0
    %292 = vmatpush1.bf16.msra.mxu0 %v242
    %293 = vmatprep.subr.bf16.mxu0 0
    %294 = vmatpush1.bf16.msra.mxu0 %v243
    %295 = vmatprep.subr.bf16.mxu0 0
    %296 = vmatpush1.bf16.msra.mxu0 %v244
    %297 = vmatprep.subr.bf16.mxu0 0
    %298 = vmatpush1.bf16.msra.mxu0 %v245
    %299 = vmatprep.subr.bf16.mxu0 0
    %300 = vmatpush1.bf16.msra.mxu0 %v246
    %301 = vmatprep.subr.bf16.mxu0 0
    %302 = vmatpush1.bf16.msra.mxu0 %v247
    %303 = vmatprep.subr.bf16.mxu0 0
    %304 = vmatpush1.bf16.msra.mxu0 %v248
    %305 = vmatprep.subr.bf16.mxu0 0
    %306 = vmatpush1.bf16.msra.mxu0 %v249
    %307 = vmatprep.subr.bf16.mxu0 0
    %308 = vmatpush1.bf16.msra.mxu0 %v250
    %309 = vmatprep.subr.bf16.mxu0 0
    %310 = vmatpush1.bf16.msra.mxu0 %v251
    %311 = vmatprep.subr.bf16.mxu0 0
    %312 = vmatpush1.bf16.msra.mxu0 %v252
    %313 = vmatprep.subr.bf16.mxu0 0
    %314 = vmatpush1.bf16.msra.mxu0 %v253
    %315 = vmatprep.subr.bf16.mxu0 0
    %316 = vmatpush1.bf16.msra.mxu0 %v254
    %317 = vmatprep.mubr.bf16.mxu0 %v104
    %318 = vmatmul.mubr.bf16.gmra.mrb[0].mxu0 %v103
    %v319 = vpop.f32.mrb[0].mxu0
    %v320 = vadd.f32 %v153, %v319
    %v321 = vpop.f32.mrb[0].mxu0
    %v322 = vpop.f32.mrb[0].mxu0
    %v323 = vpop.f32.mrb[0].mxu0
    %324 = vdwg.mxu0
    %325 = vmatprep.subr.bf16.mxu0 0
    %326 = vmatpush1.bf16.msra.mxu0 %v255
    %327 = vmatprep.subr.bf16.mxu0 0
    %328 = vmatpush1.bf16.msra.mxu0 %v256
    %329 = vmatprep.subr.bf16.mxu0 0
    %330 = vmatpush1.bf16.msra.mxu0 %v257
    %331 = vmatprep.subr.bf16.mxu0 0
    %332 = vmatpush1.bf16.msra.mxu0 %v258
    %333 = vmatprep.subr.bf16.mxu0 0
    %334 = vmatpush1.bf16.msra.mxu0 %v259
    %335 = vmatprep.subr.bf16.mxu0 0
    %336 = vmatpush1.bf16.msra.mxu0 0
    %337 = vmatprep.subr.bf16.mxu0 0
    %338 = vmatpush1.bf16.msra.mxu0 0
    %339 = vmatprep.subr.bf16.mxu0 0
    %340 = vmatpush1.bf16.msra.mxu0 0
    %341 = vmatprep.subr.bf16.mxu0 0
    %342 = vmatpush1.bf16.msra.mxu0 0
    %343 = vmatprep.subr.bf16.mxu0 0
    %344 = vmatpush1.bf16.msra.mxu0 0
    %345 = vmatprep.subr.bf16.mxu0 0
    %346 = vmatpush1.bf16.msra.mxu0 0
    %347 = vmatprep.subr.bf16.mxu0 0
    %348 = vmatpush1.bf16.msra.mxu0 0
    %349 = vmatprep.subr.bf16.mxu0 0
    %350 = vmatpush1.bf16.msra.mxu0 0
    %351 = vmatprep.subr.bf16.mxu0 0
    %352 = vmatpush1.bf16.msra.mxu0 0
    %353 = vmatprep.subr.bf16.mxu0 0
    %354 = vmatpush1.bf16.msra.mxu0 0
    %355 = vmatprep.subr.bf16.mxu0 0
    %356 = vmatpush1.bf16.msra.mxu0 0
    %357 = vmatprep.mubr.bf16.mxu0 0
    %358 = vmatmul.mubr.bf16.gmra.mrb[0].mxu0 %v283
    %v359 = vpop.f32.mrb[0].mxu0
    %v360 = vadd.f32 %v320, %v359
    %v361 = vpop.f32.mrb[0].mxu0
    %v362 = vpop.f32.mrb[0].mxu0
    %v363 = vpop.f32.mrb[0].mxu0
    %364 = vdwg.mxu0
    %v365 = vmax.f32 %v360, 0.0
    %v366 = vpack.c.bf16 %v365, %v365
    %v367 = vld [vmem:[#allocation7] sm:$0xf]
    %v368 = vld [vmem:[#allocation7 + $0x4] sm:$0xf]
    %v369 = vld [vmem:[#allocation7 + $0x8] sm:$0xf]
    %v370 = vld [vmem:[#allocation7 + $0xc] sm:$0xf]
    %v371 = vld [vmem:[#allocation7 + $0x10] sm:$0xf]
    %v372 = vld [vmem:[#allocation7 + $0x14] sm:$0xf]
    %v373 = vld [vmem:[#allocation7 + $0x18] sm:$0xf]
    %v374 = vld [vmem:[#allocation7 + $0x1c] sm:$0xf]
    %v375 = vld [vmem:[#allocation7 + $0x20] sm:$0xf]
    %v376 = vld [vmem:[#allocation7 + $0x24] sm:$0xf]
    %v377 = vld [vmem:[#allocation7 + $0x28] sm:$0xf]
    %v378 = vld [vmem:[#allocation7 + $0x2c] sm:$0xf]
    %v379 = vld [vmem:[#allocation7 + $0x30] sm:$0xf]
    %v380 = vld [vmem:[#allocation7 + $0x34] sm:$0xf]
    %v381 = vld [vmem:[#allocation7 + $0x38] sm:$0xf]
    %v382 = vld [vmem:[#allocation7 + $0x3c] sm:$0xf]
    %v383 = vld [vmem:[%s4] sm:$0x1]
    %v385 = vlaneseq
    %v386 = vshrl.u32 %v385, 7
    %v387 = vsub.s32 0, %v386
    %v388 = vrot.slane %v383, %v387
    %v406 = vunpack.c.l.b16 %v367
    %v407 = vunpack.c.l.b16 %v368
    %v408 = vunpack.c.l.b16 %v369
    %v409 = vunpack.c.l.b16 %v370
    %v410 = vunpack.c.l.b16 %v371
    %v411 = vunpack.c.l.b16 %v372
    %v412 = vunpack.c.l.b16 %v373
    %v413 = vunpack.c.l.b16 %v374
    %v414 = vunpack.c.l.b16 %v375
    %v415 = vunpack.c.l.b16 %v376
    %v416 = vunpack.c.l.b16 %v377
    %v417 = vunpack.c.l.b16 %v378
    %v418 = vunpack.c.l.b16 %v379
    %v419 = vunpack.c.l.b16 %v380
    %v420 = vunpack.c.l.b16 %v381
    %v421 = vunpack.c.l.b16 %v382
    %v422 = vpack.c.b16 %v407, %v406
    %v423 = vpack.c.b16 %v409, %v408
    %v424 = vpack.c.b16 %v411, %v410
    %v425 = vpack.c.b16 %v413, %v412
    %v426 = vpack.c.b16 %v415, %v414
    %v427 = vpack.c.b16 %v417, %v416
    %v428 = vpack.c.b16 %v419, %v418
    %v429 = vpack.c.b16 %v421, %v420
    %438 = vmatprep.subr.bf16.mxu0 0
    %439 = vmatpush1.bf16.msra.mxu0 %v422
    %440 = vmatprep.subr.bf16.mxu0 0
    %441 = vmatpush1.bf16.msra.mxu0 %v423
    %442 = vmatprep.subr.bf16.mxu0 0
    %443 = vmatpush1.bf16.msra.mxu0 %v424
    %444 = vmatprep.subr.bf16.mxu0 0
    %445 = vmatpush1.bf16.msra.mxu0 %v425
    %446 = vmatprep.subr.bf16.mxu0 0
    %447 = vmatpush1.bf16.msra.mxu0 %v426
    %448 = vmatprep.subr.bf16.mxu0 0
    %449 = vmatpush1.bf16.msra.mxu0 %v427
    %450 = vmatprep.subr.bf16.mxu0 0
    %451 = vmatpush1.bf16.msra.mxu0 %v428
    %452 = vmatprep.subr.bf16.mxu0 0
    %453 = vmatpush1.bf16.msra.mxu0 %v429
    %454 = vmatprep.subr.bf16.mxu0 0
    %455 = vmatpush1.bf16.msra.mxu0 0
    %456 = vmatprep.subr.bf16.mxu0 0
    %457 = vmatpush1.bf16.msra.mxu0 0
    %458 = vmatprep.subr.bf16.mxu0 0
    %459 = vmatpush1.bf16.msra.mxu0 0
    %460 = vmatprep.subr.bf16.mxu0 0
    %461 = vmatpush1.bf16.msra.mxu0 0
    %462 = vmatprep.subr.bf16.mxu0 0
    %463 = vmatpush1.bf16.msra.mxu0 0
    %464 = vmatprep.subr.bf16.mxu0 0
    %465 = vmatpush1.bf16.msra.mxu0 0
    %466 = vmatprep.subr.bf16.mxu0 0
    %467 = vmatpush1.bf16.msra.mxu0 0
    %468 = vmatprep.subr.bf16.mxu0 0
    %469 = vmatpush1.bf16.msra.mxu0 0
    %470 = vmatprep.mubr.bf16.mxu0 0
    %471 = vmatmul.mubr.bf16.gmra.mrb[0].mxu0 %v366
    %v472 = vpop.f32.mrb[0].mxu0
    %v473 = vadd.f32 %v388, %v472
    %v474 = vpop.f32.mrb[0].mxu0
    %v475 = vpop.f32.mrb[0].mxu0
    %v476 = vpop.f32.mrb[0].mxu0
    %477 = vdwg.mxu0
    %v478 = vmax.f32 %v473, 0.0
    %v479 = vpack.c.bf16 %v478, %v478
    %v480 = vld [vmem:[#allocation8] sm:$0xf]
    %v481 = vld [vmem:[#allocation8 + $0x4] sm:$0xf]
    %v482 = vld [vmem:[#allocation8 + $0x8] sm:$0xf]
    %v483 = vld [vmem:[#allocation8 + $0xc] sm:$0xf]
    %v484 = vld [vmem:[#allocation8 + $0x10] sm:$0xf]
    %v485 = vld [vmem:[#allocation8 + $0x14] sm:$0xf]
    %v486 = vld [vmem:[#allocation8 + $0x18] sm:$0xf]
    %v487 = vld [vmem:[#allocation8 + $0x1c] sm:$0xf]
    %v488 = vld [vmem:[#allocation8 + $0x20] sm:$0xf]
    %v489 = vld [vmem:[#allocation8 + $0x24] sm:$0xf]
    %v490 = vld [vmem:[#allocation8 + $0x28] sm:$0xf]
    %v491 = vld [vmem:[#allocation8 + $0x2c] sm:$0xf]
    %v492 = vld [vmem:[#allocation8 + $0x30] sm:$0xf]
    %v493 = vld [vmem:[#allocation8 + $0x34] sm:$0xf]
    %v494 = vld [vmem:[#allocation8 + $0x38] sm:$0xf]
    %v495 = vld [vmem:[#allocation8 + $0x3c] sm:$0xf]
    %v496 = vld [vmem:[%s6] sm:$0x1]
    %v498 = vlaneseq
    %v499 = vshrl.u32 %v498, 7
    %v500 = vsub.s32 0, %v499
    %v501 = vrot.slane %v496, %v500
    %v519 = vunpack.c.l.b16 %v480
    %v520 = vunpack.c.l.b16 %v481
    %v521 = vunpack.c.l.b16 %v482
    %v522 = vunpack.c.l.b16 %v483
    %v523 = vunpack.c.l.b16 %v484
    %v524 = vunpack.c.l.b16 %v485
    %v525 = vunpack.c.l.b16 %v486
    %v526 = vunpack.c.l.b16 %v487
    %v527 = vunpack.c.l.b16 %v488
    %v528 = vunpack.c.l.b16 %v489
    %v529 = vunpack.c.l.b16 %v490
    %v530 = vunpack.c.l.b16 %v491
    %v531 = vunpack.c.l.b16 %v492
    %v532 = vunpack.c.l.b16 %v493
    %v533 = vunpack.c.l.b16 %v494
    %v534 = vunpack.c.l.b16 %v495
    %v535 = vpack.c.b16 %v520, %v519
    %v536 = vpack.c.b16 %v522, %v521
    %v537 = vpack.c.b16 %v524, %v523
    %v538 = vpack.c.b16 %v526, %v525
    %v539 = vpack.c.b16 %v528, %v527
    %v540 = vpack.c.b16 %v530, %v529
    %v541 = vpack.c.b16 %v532, %v531
    %v542 = vpack.c.b16 %v534, %v533
    %551 = vmatprep.subr.bf16.mxu0 0
    %552 = vmatpush1.bf16.msra.mxu0 %v535
    %553 = vmatprep.subr.bf16.mxu0 0
    %554 = vmatpush1.bf16.msra.mxu0 %v536
    %555 = vmatprep.subr.bf16.mxu0 0
    %556 = vmatpush1.bf16.msra.mxu0 %v537
    %557 = vmatprep.subr.bf16.mxu0 0
    %558 = vmatpush1.bf16.msra.mxu0 %v538
    %559 = vmatprep.subr.bf16.mxu0 0
    %560 = vmatpush1.bf16.msra.mxu0 %v539
    %561 = vmatprep.subr.bf16.mxu0 0
    %562 = vmatpush1.bf16.msra.mxu0 %v540
    %563 = vmatprep.subr.bf16.mxu0 0
    %564 = vmatpush1.bf16.msra.mxu0 %v541
    %565 = vmatprep.subr.bf16.mxu0 0
    %566 = vmatpush1.bf16.msra.mxu0 %v542
    %567 = vmatprep.subr.bf16.mxu0 0
    %568 = vmatpush1.bf16.msra.mxu0 0
    %569 = vmatprep.subr.bf16.mxu0 0
    %570 = vmatpush1.bf16.msra.mxu0 0
    %571 = vmatprep.subr.bf16.mxu0 0
    %572 = vmatpush1.bf16.msra.mxu0 0
    %573 = vmatprep.subr.bf16.mxu0 0
    %574 = vmatpush1.bf16.msra.mxu0 0
    %575 = vmatprep.subr.bf16.mxu0 0
    %576 = vmatpush1.bf16.msra.mxu0 0
    %577 = vmatprep.subr.bf16.mxu0 0
    %578 = vmatpush1.bf16.msra.mxu0 0
    %579 = vmatprep.subr.bf16.mxu0 0
    %580 = vmatpush1.bf16.msra.mxu0 0
    %581 = vmatprep.subr.bf16.mxu0 0
    %582 = vmatpush1.bf16.msra.mxu0 0
    %583 = vmatprep.mubr.bf16.mxu0 0
    %584 = vmatmul.mubr.bf16.gmra.mrb[0].mxu0 %v479
    %v585 = vpop.f32.mrb[0].mxu0
    %v586 = vadd.f32 %v501, %v585
    %v587 = vpop.f32.mrb[0].mxu0
    %v588 = vpop.f32.mrb[0].mxu0
    %v589 = vpop.f32.mrb[0].mxu0
    %590 = vdwg.mxu0
    %v591 = vmax.f32 %v586, 0.0
    %v592 = vpack.c.bf16 %v591, %v591
    %v593 = vld [vmem:[#allocation10] sm:$0xf]
    %v594 = vld [vmem:[#allocation10 + $0x4] sm:$0xf]
    %v595 = vld [vmem:[#allocation10 + $0x8] sm:$0xf]
    %v596 = vld [vmem:[#allocation10 + $0xc] sm:$0xf]
    %v597 = vld [vmem:[#allocation10 + $0x10] sm:$0xf]
    %v598 = vld [vmem:[#allocation10 + $0x14] sm:$0xf]
    %v599 = vld [vmem:[#allocation10 + $0x18] sm:$0xf]
    %v600 = vld [vmem:[#allocation10 + $0x1c] sm:$0xf]
    %v601 = vld [vmem:[#allocation10 + $0x20] sm:$0xf]
    %v602 = vld [vmem:[#allocation10 + $0x24] sm:$0xf]
    %v603 = vld [vmem:[#allocation10 + $0x28] sm:$0xf]
    %v604 = vld [vmem:[#allocation10 + $0x2c] sm:$0xf]
    %v605 = vld [vmem:[#allocation10 + $0x30] sm:$0xf]
    %v606 = vld [vmem:[#allocation10 + $0x34] sm:$0xf]
    %v607 = vld [vmem:[#allocation10 + $0x38] sm:$0xf]
    %v608 = vld [vmem:[#allocation10 + $0x3c] sm:$0xf]
    %v609 = vld [vmem:[%s8] sm:$0x1]
    %v611 = vlaneseq
    %v612 = vshrl.u32 %v611, 7
    %v613 = vsub.s32 0, %v612
    %v614 = vrot.slane %v609, %v613
    %v632 = vunpack.c.l.b16 %v593
    %v633 = vunpack.c.l.b16 %v594
    %v634 = vunpack.c.l.b16 %v595
    %v635 = vunpack.c.l.b16 %v596
    %v636 = vunpack.c.l.b16 %v597
    %v637 = vunpack.c.l.b16 %v598
    %v638 = vunpack.c.l.b16 %v599
    %v639 = vunpack.c.l.b16 %v600
    %v640 = vunpack.c.l.b16 %v601
    %v641 = vunpack.c.l.b16 %v602
    %v642 = vunpack.c.l.b16 %v603
    %v643 = vunpack.c.l.b16 %v604
    %v644 = vunpack.c.l.b16 %v605
    %v645 = vunpack.c.l.b16 %v606
    %v646 = vunpack.c.l.b16 %v607
    %v647 = vunpack.c.l.b16 %v608
    %v648 = vpack.c.b16 %v633, %v632
    %v649 = vpack.c.b16 %v635, %v634
    %v650 = vpack.c.b16 %v637, %v636
    %v651 = vpack.c.b16 %v639, %v638
    %v652 = vpack.c.b16 %v641, %v640
    %v653 = vpack.c.b16 %v643, %v642
    %v654 = vpack.c.b16 %v645, %v644
    %v655 = vpack.c.b16 %v647, %v646
    %664 = vmatprep.subr.bf16.mxu0 0
    %665 = vmatpush1.bf16.msra.mxu0 %v648
    %666 = vmatprep.subr.bf16.mxu0 0
    %667 = vmatpush1.bf16.msra.mxu0 %v649
    %668 = vmatprep.subr.bf16.mxu0 0
    %669 = vmatpush1.bf16.msra.mxu0 %v650
    %670 = vmatprep.subr.bf16.mxu0 0
    %671 = vmatpush1.bf16.msra.mxu0 %v651
    %672 = vmatprep.subr.bf16.mxu0 0
    %673 = vmatpush1.bf16.msra.mxu0 %v652
    %674 = vmatprep.subr.bf16.mxu0 0
    %675 = vmatpush1.bf16.msra.mxu0 %v653
    %676 = vmatprep.subr.bf16.mxu0 0
    %677 = vmatpush1.bf16.msra.mxu0 %v654
    %678 = vmatprep.subr.bf16.mxu0 0
    %679 = vmatpush1.bf16.msra.mxu0 %v655
    %680 = vmatprep.subr.bf16.mxu0 0
    %681 = vmatpush1.bf16.msra.mxu0 0
    %682 = vmatprep.subr.bf16.mxu0 0
    %683 = vmatpush1.bf16.msra.mxu0 0
    %684 = vmatprep.subr.bf16.mxu0 0
    %685 = vmatpush1.bf16.msra.mxu0 0
    %686 = vmatprep.subr.bf16.mxu0 0
    %687 = vmatpush1.bf16.msra.mxu0 0
    %688 = vmatprep.subr.bf16.mxu0 0
    %689 = vmatpush1.bf16.msra.mxu0 0
    %690 = vmatprep.subr.bf16.mxu0 0
    %691 = vmatpush1.bf16.msra.mxu0 0
    %692 = vmatprep.subr.bf16.mxu0 0
    %693 = vmatpush1.bf16.msra.mxu0 0
    %694 = vmatprep.subr.bf16.mxu0 0
    %695 = vmatpush1.bf16.msra.mxu0 0
    %696 = vmatprep.mubr.bf16.mxu0 0
    %697 = vmatmul.mubr.bf16.gmra.mrb[0].mxu0 %v592
    %v698 = vpop.f32.mrb[0].mxu0
    %v699 = vadd.f32 %v614, %v698
    %v700 = vpop.f32.mrb[0].mxu0
    %v701 = vpop.f32.mrb[0].mxu0
    %v702 = vpop.f32.mrb[0].mxu0
    %703 = vdwg.mxu0
    %vm704 = vcmask 64512
    %705 = vst.msk [vmem:[#allocation11] sm:$0xff] %vm704, %v699
    // Predicated region
    $region58: #{tpu_custom_call.1} parent=1 // pred_check
      _
    $region59: #{tpu_custom_call.1} parent=1 // pred_check_branch
      %707 = sbr.rel (0) target = $region61
    $region60: #{tpu_custom_call.1} parent=1 // pred_region
      %s709 = ssub.s32 128, 128
      %710 = vsyncadd [#allocation4], %s709
      %s712 = sshll.u32 [#allocation11], 4
      %s713 = int_to_ptr.vmem [resolvable:$true] %s712
      %715 = dma.vmem_to_hbm [thread:$0]  %s713, 128, %s9, [#allocation4]
    $region61: #{tpu_custom_call.1} parent=1 // pred_fallthru
      _
    // Predicated region
    $region62: #{tpu_custom_call.1} parent=1 // pred_check
      _
    $region63: #{tpu_custom_call.1} parent=1 // pred_check_branch
      %717 = sbr.rel (0) target = $region65
    $region64: #{tpu_custom_call.1} parent=1 // pred_region
      %718 = dma.done [#allocation4], 128
    $region65: #{tpu_custom_call.1} parent=1 // pred_fallthru
      _
    %719 = vsyncpa [#allocation3], 1
    %720 = vsyncpa [#allocation6], 1
    %721 = vsyncpa [#allocation9], 1
    %722 = vsyncpa [#allocation4], 1

</llo_original>
